<compile_context>
chip_gen: v5e
topology: v5e:2x2
jax: 0.10.0
libtpu: 0.0.40
codegen_flags: <defaults>
</compile_context>

<pallas_src>
import jax
import jax.numpy as jnp
from jax.experimental import pallas as pl
from jax.experimental.pallas import tpu as pltpu


def _squeeze_copy_kernel(x_ref, o_ref, sem):
    # x_ref / o_ref are full (B, C) HBM refs (memory_space=pl.ANY): issue one
    # contiguous HBM->HBM DMA and wait for completion.  No VMEM staging.
    cp = pltpu.make_async_copy(x_ref, o_ref, sem)
    cp.start()
    cp.wait()


def squeeze_last_two(x: jax.Array) -> jax.Array:
    """x: (B, C, 1, 1) -> (B, C), same dtype. Mirrors SqueezeLastTwo.forward.

    TODO(synk): in production, prefer `jnp.reshape(x, x.shape[:2])` (free view)
    or fuse the (B, C) layout into the producing kernel; this explicit copy
    exists only to express the op as a Pallas kernel.
    """
    assert x.ndim == 4 and x.shape[2] == 1 and x.shape[3] == 1, x.shape
    B, C = x.shape[0], x.shape[1]

    # Free, metadata-only squeeze so the DMA's src/dst are identical slabs.
    x2d = jnp.reshape(x, (B, C))

    return pl.pallas_call(
        _squeeze_copy_kernel,
        out_shape=jax.ShapeDtypeStruct((B, C), x.dtype),
        in_specs=[pl.BlockSpec(memory_space=pl.ANY)],
        out_specs=pl.BlockSpec(memory_space=pl.ANY),
        scratch_shapes=[pltpu.SemaphoreType.DMA(())],
    )(x2d)


def _check(B, C, dtype, key):
    x = jax.random.normal(key, (B, C, 1, 1), dtype=jnp.float32).astype(dtype)
    out = squeeze_last_two(x)
    jax.block_until_ready(out)
    ref = jnp.reshape(x, (B, C))
    assert out.shape == (B, C), out.shape
    assert out.dtype == x.dtype, out.dtype
    assert jnp.array_equal(out, ref), f"mismatch vs reference reshape for {(B, C, dtype)}"


if __name__ == "__main__":
    key = jax.random.PRNGKey(0)
    k0, k1, k2 = jax.random.split(key, 3)

    # Small, single-DMA case (the module's typical post-GAP use).
    _check(2, 4, jnp.float32, k0)

    # Non-128-multiple C and non-8-multiple B: still a single contiguous DMA,
    # no masked stores, no alignment constraints.
    _check(20, 136, jnp.float32, k1)

    # bf16 case.
    _check(48, 256, jnp.bfloat16, k2)

    print("KERNEL_OK")
</pallas_src>

<mosaic_0001>
module attributes {stable_mosaic.version = 11 : i64} {
  func.func @_squeeze_copy_kernel(%arg0: memref<2x4xf32, #tpu.memory_space<any>>, %arg1: memref<2x4xf32, #tpu.memory_space<any>>, %arg2: memref<!tpu.dma_semaphore, #tpu.memory_space<semaphore_mem>>) attributes {dimension_semantics = [], scalar_prefetch = 0 : i64, scratch_operands = 1 : i64, tpu.core_type = #tpu.core_type<tc>} {
    tpu.enqueue_dma source(%arg0 : memref<2x4xf32, #tpu.memory_space<any>>) target(%arg1 : memref<2x4xf32, #tpu.memory_space<any>>) target_semaphore(%arg2 : memref<!tpu.dma_semaphore, #tpu.memory_space<semaphore_mem>>)
    tpu.wait_dma2 semaphore(%arg2 : memref<!tpu.dma_semaphore, #tpu.memory_space<semaphore_mem>>) src(%arg0 : memref<2x4xf32, #tpu.memory_space<any>>) dst(%arg1 : memref<2x4xf32, #tpu.memory_space<any>>)
    return
  }
}

</mosaic_0001>

<llo_original>
// kernel: tpu_custom_call.1
$region0: #{tpu_custom_call.1}
  #allocation0 [shape = 'u32[]', space=smem, size = 0x4, offset = 0x4, fixed_abs, tag = 'smem constant byte address 0x4 - core index']
  #allocation1 [shape = 'u32[72,128]{1,0:T(1,128)}', space=vmem, size = 0x9000, scoped, tag = 'internal scratch']
  #allocation2 [shape = 's32[1]{0}', space=sflag, size = 0x4, scoped, tag = 'scratch operand']
  #allocation3 [shape = 's32[]', space=sflag, size = 0x4, offset = 0, fixed_abs, tag = 'sflag constant byte address 0x0 - dummy sync flag']
  #allocation4 [shape = 'u32[0]{0}', space=smem, size = 0, offset = 0, fixed_abs, tag = 'smem constant byte address 0x0 - null']
  %s0 = inlined_call_operand.hbm [shape: f32[2,4], index: 0, kind: input, shape index: {}]
  %s1 = inlined_call_operand.hbm [shape: f32[2,4], index: 1, kind: output, shape index: {}]
  %s2 = sld [smem:[#allocation0]]
  $region2: #{tpu_custom_call.1} parent=0
    _
  %s4 = ssub.s32 1, %s2
  %s5 = scalar_select 0, %s4, %s2
  %s7 = sshll.u32 1, 14
  %s8 = sxor.u32 4294967295, %s7
  %s10 = sshll.u32 %s0, 4
  %s11 = int_to_ptr.hbm [resolvable:$true] %s10
  %s12 = sshll.u32 %s1, 4
  %s13 = int_to_ptr.hbm [resolvable:$true] %s12
  %16 = dma.general %s11, 32, %s13, [#allocation2], [#allocation3], [#allocation4], 0, 0
  %s17 = smul.u32 2, 1
  %s18 = sshll.u32 %s17, 4
  %19 = dma.done [#allocation2], %s18
  %20 = vsyncmov [#allocation2]
  %s21 = vpop.sfrf %20
  %p22 = scmp.eq.s32.totalorder %s21, 0
  %p23 = pneg %p22
  %25 = shalt.err (%p23)

</llo_original>
